<compile_context>
chip_gen: v7x
topology: tpu7x:2x2x1
jax: 0.10.0
libtpu: 0.0.40
codegen_flags: <defaults>
</compile_context>

<pallas_src>
import functools
import math

import jax
import jax.numpy as jnp
from jax import lax
from jax.experimental import pallas as pl
from jax.experimental.pallas import tpu as pltpu


def _round_up(v, m):
    return (v + m - 1) // m * m


def _linear_kernel(x_ref, w_ref, b_ref, o_ref, *, compute_dtype):
    # x_ref: (tm, Kp)   activation row-tile
    # w_ref: (Np, Kp)   full weight, PyTorch (out, in) layout, VMEM-resident
    # b_ref: (1, Np)    bias row, VMEM-resident
    # o_ref: (tm, Np)   lane-dense output tile (Np is a multiple of 128)
    x = x_ref[...]
    w = w_ref[...]
    if compute_dtype is not None:
        x = x.astype(compute_dtype)
        w = w.astype(compute_dtype)
    # Contract x's dim 1 (K) with w's dim 1 (K) == x @ w.T on the MXU,
    # no host-side transpose of the weight.
    acc = lax.dot_general(
        x, w,
        dimension_numbers=(((1,), (1,)), ((), ())),
        preferred_element_type=jnp.float32,
    )
    acc = acc + b_ref[...].astype(jnp.float32)   # broadcast (1, Np) over rows
    o_ref[...] = acc.astype(o_ref.dtype)


def linear_norm_forward(x, weight, bias, *, compute_dtype=None, tm_target=512):
    """LinearNorm forward: y = x @ weight.T + bias.

    x:      (..., in_dim)
    weight: (out_dim, in_dim)  -- PyTorch nn.Linear layout, never transposed on host
    bias:   (out_dim,)
    compute_dtype: optional MXU input dtype (e.g. jnp.bfloat16 on v6e/v7x);
                   accumulation and bias add stay in f32.
    """
    in_dim = x.shape[-1]
    out_dim = weight.shape[0]
    lead_shape = x.shape[:-1]
    m = int(math.prod(lead_shape)) if lead_shape else 1

    # Lane-dense padding: K and N up to multiples of 128 (zero padding along K
    # contributes 0 to the dot; padded N columns are sliced off afterwards).
    k_pad = _round_up(in_dim, 128)
    n_pad = _round_up(out_dim, 128)

    # Row tile: multiple of 8 sublanes; target ~512 rows for pipelining, never
    # larger than the (padded) problem.
    tm = _round_up(min(tm_target, _round_up(m, 8)), 8)
    m_pad = _round_up(m, tm)

    x2d = x.reshape(m, in_dim)
    x2d = jnp.pad(x2d, ((0, m_pad - m), (0, k_pad - in_dim)))
    # TODO(synk): in a real model pad weight/bias once at init, not per call.
    w_p = jnp.pad(weight, ((0, n_pad - out_dim), (0, k_pad - in_dim)))
    b_p = jnp.pad(bias, (0, n_pad - out_dim)).reshape(1, n_pad)

    grid = (m_pad // tm,)

    flops = 2 * m_pad * k_pad * n_pad
    bytes_accessed = (x2d.size * x2d.dtype.itemsize
                      + w_p.size * w_p.dtype.itemsize
                      + b_p.size * b_p.dtype.itemsize
                      + m_pad * n_pad * jnp.dtype(x.dtype).itemsize)

    # VMEM footprint: double-buffered x/out tiles + resident weight/bias, with
    # generous headroom.  Keeps tiles honest on v7x's smaller VMEM.
    isz = jnp.dtype(x.dtype).itemsize
    wsz = jnp.dtype(weight.dtype).itemsize
    vmem_est = (2 * tm * k_pad * isz
                + 2 * tm * n_pad * isz
                + 2 * (k_pad * n_pad + n_pad) * wsz)
    vmem_limit = int(min(128 * 1024 * 1024,
                         max(32 * 1024 * 1024, 3 * vmem_est)))

    out = pl.pallas_call(
        functools.partial(_linear_kernel, compute_dtype=compute_dtype),
        out_shape=jax.ShapeDtypeStruct((m_pad, n_pad), x.dtype),
        grid_spec=pltpu.PrefetchScalarGridSpec(
            num_scalar_prefetch=0,
            grid=grid,
            in_specs=[
                pl.BlockSpec((tm, k_pad), lambda i: (i, 0)),     # x tile marches over M
                pl.BlockSpec((n_pad, k_pad), lambda i: (0, 0)),  # weight: VMEM-resident
                pl.BlockSpec((1, n_pad), lambda i: (0, 0)),      # bias: VMEM-resident
            ],
            out_specs=pl.BlockSpec((tm, n_pad), lambda i: (i, 0)),
        ),
        compiler_params=pltpu.CompilerParams(
            dimension_semantics=("parallel",),   # megacore / v7x 2-TC sharding
            vmem_limit_bytes=vmem_limit,
        ),
        cost_estimate=pl.CostEstimate(
            flops=flops, transcendentals=0, bytes_accessed=bytes_accessed),
    )(x2d, w_p, b_p)

    return out[:m, :out_dim].reshape(*lead_shape, out_dim)


def xavier_uniform(key, out_dim, in_dim, gain=1.0, dtype=jnp.float32):
    # Matches torch.nn.init.xavier_uniform_ for a (out_dim, in_dim) weight.
    bound = gain * math.sqrt(6.0 / (in_dim + out_dim))
    return jax.random.uniform(key, (out_dim, in_dim), dtype=dtype,
                              minval=-bound, maxval=bound)


if __name__ == "__main__":
    # Module config: LinearNorm(in_dim=32, out_dim=64, bias=True, w_init_gain='linear')
    in_dim, out_dim = 32, 64
    batch, seq = 2, 8

    key = jax.random.PRNGKey(0)
    k_w, k_b, k_x = jax.random.split(key, 3)

    weight = xavier_uniform(k_w, out_dim, in_dim, gain=1.0)  # gain('linear') = 1.0
    # PyTorch Linear default bias init: U(-1/sqrt(in_dim), 1/sqrt(in_dim))
    b_bound = 1.0 / math.sqrt(in_dim)
    bias = jax.random.uniform(k_b, (out_dim,), minval=-b_bound, maxval=b_bound)

    x = jax.random.normal(k_x, (batch, seq, in_dim), dtype=jnp.float32)

    y = linear_norm_forward(x, weight, bias)   # f32 path: matches PyTorch numerics
    y = jax.block_until_ready(y)

    # Sanity check against plain-JAX reference.
    y_ref = x @ weight.T + bias
    assert y.shape == (batch, seq, out_dim)
    assert jnp.allclose(y, y_ref, atol=1e-5, rtol=1e-5)

    print("KERNEL_OK")
</pallas_src>

<mosaic_0001>
module attributes {stable_mosaic.version = 11 : i64} {
  func.func @_linear_kernel(%arg0: i32, %arg1: memref<16x128xf32, #tpu.memory_space<vmem>>, %arg2: memref<128x128xf32, #tpu.memory_space<vmem>>, %arg3: memref<1x128xf32, #tpu.memory_space<vmem>>, %arg4: memref<16x128xf32, #tpu.memory_space<vmem>>) attributes {dimension_semantics = [#tpu.dimension_semantics<parallel>], iteration_bounds = array<i64: 1>, scalar_prefetch = 0 : i64, scratch_operands = 0 : i64, tpu.core_type = #tpu.core_type<tc>, window_params = [{transform_indices = @transform_0, window_bounds = array<i64: 16, 128>}, {pipeline_mode = #tpu.pipeline_mode<synchronous>, transform_indices = @transform_1, window_bounds = array<i64: 128, 128>}, {pipeline_mode = #tpu.pipeline_mode<synchronous>, transform_indices = @transform_2, window_bounds = array<i64: 1, 128>}, {transform_indices = @transform_3, window_bounds = array<i64: 16, 128>}]} {
    %c0 = arith.constant 0 : index
    %c0_0 = arith.constant 0 : index
    %0 = vector.load %arg1[%c0, %c0_0] : memref<16x128xf32, #tpu.memory_space<vmem>>, vector<16x128xf32>
    %c0_1 = arith.constant 0 : index
    %c0_2 = arith.constant 0 : index
    %1 = vector.load %arg2[%c0_1, %c0_2] : memref<128x128xf32, #tpu.memory_space<vmem>>, vector<128x128xf32>
    %cst = arith.constant dense<0.000000e+00> : vector<16x128xf32>
    %2 = tpu.matmul %0, %1, %cst {dimension_numbers = #tpu.dot_dimension_numbers<[1], [1], [0], [0], [0, 0, 1, 0], [], []>} : vector<16x128xf32>, vector<128x128xf32>, vector<16x128xf32> -> vector<16x128xf32>
    %c0_3 = arith.constant 0 : index
    %c0_4 = arith.constant 0 : index
    %3 = vector.load %arg3[%c0_3, %c0_4] : memref<1x128xf32, #tpu.memory_space<vmem>>, vector<1x128xf32>
    %4 = vector.broadcast %3 : vector<1x128xf32> to vector<16x128xf32>
    %5 = arith.addf %2, %4 : vector<16x128xf32>
    %c0_5 = arith.constant 0 : index
    %c0_6 = arith.constant 0 : index
    %6 = vector.load %arg4[%c0_5, %c0_6] : memref<16x128xf32, #tpu.memory_space<vmem>>, vector<16x128xf32>
    tpu.vector_store %arg4[%c0_5, %c0_6], %5 {strides = array<i32>} : memref<16x128xf32, #tpu.memory_space<vmem>>, vector<16x128xf32>,
    return
  }
  func.func @transform_0(%arg0: i32) -> (i32, i32) {
    %c0_i32 = arith.constant 0 : i32
    %c0_i32_0 = arith.constant 0 : i32
    return %arg0, %c0_i32 : i32, i32
  }
  func.func @transform_1(%arg0: i32) -> (i32, i32) {
    %c0_i32 = arith.constant 0 : i32
    %c0_i32_0 = arith.constant 0 : i32
    %c0_i32_1 = arith.constant 0 : i32
    return %c0_i32, %c0_i32_0 : i32, i32
  }
  func.func @transform_2(%arg0: i32) -> (i32, i32) {
    %c0_i32 = arith.constant 0 : i32
    %c0_i32_0 = arith.constant 0 : i32
    %c0_i32_1 = arith.constant 0 : i32
    return %c0_i32, %c0_i32_0 : i32, i32
  }
  func.func @transform_3(%arg0: i32) -> (i32, i32) {
    %c0_i32 = arith.constant 0 : i32
    %c0_i32_0 = arith.constant 0 : i32
    return %arg0, %c0_i32 : i32, i32
  }
}

</mosaic_0001>

<llo_original>
// kernel: tpu_custom_call.1
$region0: #{tpu_custom_call.1}
  #allocation0 [shape = 'u32[]', space=smem, size = 0x4, offset = 0x4, fixed_abs, tag = 'smem constant byte address 0x4 - core index']
  #allocation1 [shape = 'u32[144,128]{1,0:T(1,128)}', space=vmem, size = 0x12000, scoped, tag = 'internal scratch']
  %s0 = inlined_call_operand.hbm [shape: f32[16,128], index: 0, kind: input, shape index: {}]
  %s1 = inlined_call_operand.hbm [shape: f32[128,128], index: 1, kind: input, shape index: {}]
  %s2 = inlined_call_operand.vmem [shape: f32[1,128], index: 2, kind: input, shape index: {}]
  %s3 = inlined_call_operand.hbm [shape: f32[16,128], index: 3, kind: output, shape index: {}]
  %s4 = sld [smem:[#allocation0]]
  $region30: #{tpu_custom_call.1} parent=0
    _
  %s6 = ssub.s32 1, %s4
  %s7 = scalar_select 0, %s6, %s4
  $region1: #{tpu_custom_call.1} parent=0
    #allocation2 [shape = 'u8[8192]{0}', space=vmem, size = 0x2000, scoped, tag = 'input window, operand 0, single buffered']
    #allocation3 [shape = 's32[1]{0}', space=sflag, size = 0x4, scoped, tag = 'scoped memory for tpu_custom_call.1']
    #allocation4 [shape = 's32[1]{0}', space=sflag, size = 0x4, scoped, tag = 'scoped memory for tpu_custom_call.1']
    #allocation5 [shape = 'u8[65536]{0}', space=vmem, size = 0x10000, scoped, tag = 'input window, operand 1, single buffered']
    #allocation6 [shape = 's32[1]{0}', space=sflag, size = 0x4, scoped, tag = 'scoped memory for tpu_custom_call.1']
    #allocation7 [shape = 'u8[8192]{0}', space=vmem, size = 0x2000, scoped, tag = 'output window, operand 0, single buffered']
    %8 = vsyncpa [#allocation3], 0
    %9 = vsyncpa [#allocation6], 0
    %10 = vsyncpa [#allocation4], 0
    // Predicated region
    $region2: #{tpu_custom_call.1} parent=1 // pred_check
      _
    $region3: #{tpu_custom_call.1} parent=1 // pred_check_branch
      %12 = sbr.rel (0) target = $region5
    $region4: #{tpu_custom_call.1} parent=1 // pred_region
      %s14 = ssub.s32 256, 256
      %15 = vsyncadd [#allocation3], %s14
      %s16 = sshll.u32 [#allocation2], 4
      %s17 = int_to_ptr.vmem [resolvable:$true] %s16
      %22 = dma.hbm_to_vmem [thread:$0]  %s0, 256, %s17, [#allocation3], 128, 128, 8
    $region5: #{tpu_custom_call.1} parent=1 // pred_fallthru
      _
    // Predicated region
    $region6: #{tpu_custom_call.1} parent=1 // pred_check
      _
    $region7: #{tpu_custom_call.1} parent=1 // pred_check_branch
      %24 = sbr.rel (0) target = $region9
    $region8: #{tpu_custom_call.1} parent=1 // pred_region
      %s26 = ssub.s32 2048, 2048
      %27 = vsyncadd [#allocation6], %s26
      %s28 = sshll.u32 [#allocation5], 4
      %s29 = int_to_ptr.vmem [resolvable:$true] %s28
      %34 = dma.hbm_to_vmem [thread:$0]  %s1, 2048, %s29, [#allocation6], 128, 128, 8
    $region9: #{tpu_custom_call.1} parent=1 // pred_fallthru
      _
    // Predicated region
    $region10: #{tpu_custom_call.1} parent=1 // pred_check
      _
    $region11: #{tpu_custom_call.1} parent=1 // pred_check_branch
      %36 = sbr.rel (0) target = $region13
    $region12: #{tpu_custom_call.1} parent=1 // pred_region
      _
    $region13: #{tpu_custom_call.1} parent=1 // pred_fallthru
      _
    // Predicated region
    $region14: #{tpu_custom_call.1} parent=1 // pred_check
      _
    $region15: #{tpu_custom_call.1} parent=1 // pred_check_branch
      %38 = sbr.rel (0) target = $region17
    $region16: #{tpu_custom_call.1} parent=1 // pred_region
      %39 = dma.done [#allocation3], 256
    $region17: #{tpu_custom_call.1} parent=1 // pred_fallthru
      _
    // Predicated region
    $region18: #{tpu_custom_call.1} parent=1 // pred_check
      _
    $region19: #{tpu_custom_call.1} parent=1 // pred_check_branch
      %41 = sbr.rel (0) target = $region21
    $region20: #{tpu_custom_call.1} parent=1 // pred_region
      %42 = dma.done [#allocation6], 2048
    $region21: #{tpu_custom_call.1} parent=1 // pred_fallthru
      _
    %v43 = vld [vmem:[#allocation2] sm:$0xff]
    %v44 = vld [vmem:[#allocation2 + $0x8] sm:$0xff]
    %v45 = vld [vmem:[#allocation5] sm:$0xff]
    %v46 = vld [vmem:[#allocation5 + $0x8] sm:$0xff]
    %v47 = vld [vmem:[#allocation5 + $0x10] sm:$0xff]
    %v48 = vld [vmem:[#allocation5 + $0x18] sm:$0xff]
    %v49 = vld [vmem:[#allocation5 + $0x20] sm:$0xff]
    %v50 = vld [vmem:[#allocation5 + $0x28] sm:$0xff]
    %v51 = vld [vmem:[#allocation5 + $0x30] sm:$0xff]
    %v52 = vld [vmem:[#allocation5 + $0x38] sm:$0xff]
    %v53 = vld [vmem:[#allocation5 + $0x40] sm:$0xff]
    %v54 = vld [vmem:[#allocation5 + $0x48] sm:$0xff]
    %v55 = vld [vmem:[#allocation5 + $0x50] sm:$0xff]
    %v56 = vld [vmem:[#allocation5 + $0x58] sm:$0xff]
    %v57 = vld [vmem:[#allocation5 + $0x60] sm:$0xff]
    %v58 = vld [vmem:[#allocation5 + $0x68] sm:$0xff]
    %v59 = vld [vmem:[#allocation5 + $0x70] sm:$0xff]
    %v60 = vld [vmem:[#allocation5 + $0x78] sm:$0xff]
    %v61 = vld [vmem:[%s2] sm:$0x1]
    %v63 = vlaneseq
    %v64 = vshrl.u32 %v63, 7
    %v65 = vsub.s32 0, %v64
    %v66 = vrot.slane %v61, %v65
    %68 = vmatprep.subr.mxu0 0.0
    %69 = vmatpush1.xpose.msra.mxu0 %v45
    %70 = vmatprep.subr.mxu0 0.0
    %71 = vmatpush1.xpose.msra.mxu0 %v46
    %72 = vmatprep.subr.mxu0 0.0
    %73 = vmatpush1.xpose.msra.mxu0 %v47
    %74 = vmatprep.subr.mxu0 0.0
    %75 = vmatpush1.xpose.msra.mxu0 %v48
    %76 = vmatprep.subr.mxu0 0.0
    %77 = vmatpush1.xpose.msra.mxu0 %v49
    %78 = vmatprep.subr.mxu0 0.0
    %79 = vmatpush1.xpose.msra.mxu0 %v50
    %80 = vmatprep.subr.mxu0 0.0
    %81 = vmatpush1.xpose.msra.mxu0 %v51
    %82 = vmatprep.subr.mxu0 0.0
    %83 = vmatpush1.xpose.msra.mxu0 %v52
    %84 = vmatprep.subr.mxu0 0.0
    %85 = vmatpush1.xpose.msra.mxu0 %v53
    %86 = vmatprep.subr.mxu0 0.0
    %87 = vmatpush1.xpose.msra.mxu0 %v54
    %88 = vmatprep.subr.mxu0 0.0
    %89 = vmatpush1.xpose.msra.mxu0 %v55
    %90 = vmatprep.subr.mxu0 0.0
    %91 = vmatpush1.xpose.msra.mxu0 %v56
    %92 = vmatprep.subr.mxu0 0.0
    %93 = vmatpush1.xpose.msra.mxu0 %v57
    %94 = vmatprep.subr.mxu0 0.0
    %95 = vmatpush1.xpose.msra.mxu0 %v58
    %96 = vmatprep.subr.mxu0 0.0
    %97 = vmatpush1.xpose.msra.mxu0 %v59
    %98 = vmatprep.subr.mxu0 0.0
    %99 = vmatpush1.xpose.msra.mxu0 %v60
    %100 = vmatprep.subr.mxu0 0.0
    %101 = vmatpush1.xpose.msra.mxu0 0.0
    %102 = vmatprep.subr.mxu0 0.0
    %103 = vmatpush1.xpose.msra.mxu0 0.0
    %104 = vmatprep.subr.mxu0 0.0
    %105 = vmatpush1.xpose.msra.mxu0 0.0
    %106 = vmatprep.subr.mxu0 0.0
    %107 = vmatpush1.xpose.msra.mxu0 0.0
    %108 = vmatprep.subr.mxu0 0.0
    %109 = vmatpush1.xpose.msra.mxu0 0.0
    %110 = vmatprep.subr.mxu0 0.0
    %111 = vmatpush1.xpose.msra.mxu0 0.0
    %112 = vmatprep.subr.mxu0 0.0
    %113 = vmatpush1.xpose.msra.mxu0 0.0
    %114 = vmatprep.subr.mxu0 0.0
    %115 = vmatpush1.xpose.msra.mxu0 0.0
    %116 = vmatprep.subr.mxu0 0.0
    %117 = vmatpush1.xpose.msra.mxu0 0.0
    %118 = vmatprep.subr.mxu0 0.0
    %119 = vmatpush1.xpose.msra.mxu0 0.0
    %120 = vmatprep.subr.mxu0 0.0
    %121 = vmatpush1.xpose.msra.mxu0 0.0
    %122 = vmatprep.subr.mxu0 0.0
    %123 = vmatpush1.xpose.msra.mxu0 0.0
    %124 = vmatprep.subr.mxu0 0.0
    %125 = vmatpush1.xpose.msra.mxu0 0.0
    %126 = vmatprep.subr.mxu0 0.0
    %127 = vmatpush1.xpose.msra.mxu0 0.0
    %128 = vmatprep.subr.mxu0 0.0
    %129 = vmatpush1.xpose.msra.mxu0 0.0
    %130 = vmatprep.subr.mxu0 0.0
    %131 = vmatpush1.xpose.msra.mxu0 0.0
    %132 = vmatprep.mubr.f32.mxu0 0.0
    %133 = vmatmul.mubr.f32.gmra.mrb[0].mxu0 %v43
    %v134 = vpop.f32.mrb[0].mxu0
    %v135 = vadd.f32 %v66, %v134
    %v136 = vpop.f32.mrb[0].mxu0
    %137 = vmatprep.mubr.f32.mxu0 0.0
    %138 = vmatmul.mubr.f32.gmra.mrb[0].mxu0 %v44
    %v139 = vpop.f32.mrb[0].mxu0
    %v140 = vadd.f32 %v66, %v139
    %v141 = vpop.f32.mrb[0].mxu0
    %142 = vdwg.mxu0
    %143 = vst [vmem:[#allocation7] sm:$0xff] %v135
    %144 = vst [vmem:[#allocation7 + $0x8] sm:$0xff] %v140
    // Predicated region
    $region22: #{tpu_custom_call.1} parent=1 // pred_check
      _
    $region23: #{tpu_custom_call.1} parent=1 // pred_check_branch
      %146 = sbr.rel (0) target = $region25
    $region24: #{tpu_custom_call.1} parent=1 // pred_region
      %s148 = ssub.s32 256, 256
      %149 = vsyncadd [#allocation4], %s148
      %s150 = sshll.u32 [#allocation7], 4
      %s151 = int_to_ptr.vmem [resolvable:$true] %s150
      %156 = dma.vmem_to_hbm [thread:$0]  %s151, 256, %s3, [#allocation4], 128, 128, 8
    $region25: #{tpu_custom_call.1} parent=1 // pred_fallthru
      _
    // Predicated region
    $region26: #{tpu_custom_call.1} parent=1 // pred_check
      _
    $region27: #{tpu_custom_call.1} parent=1 // pred_check_branch
      %158 = sbr.rel (0) target = $region29
    $region28: #{tpu_custom_call.1} parent=1 // pred_region
      %159 = dma.done [#allocation4], 256
    $region29: #{tpu_custom_call.1} parent=1 // pred_fallthru
      _
    %160 = vsyncpa [#allocation3], 1
    %161 = vsyncpa [#allocation6], 1
    %162 = vsyncpa [#allocation4], 1

</llo_original>
